<compile_context>
chip_gen: v5e
topology: v5e:2x2
jax: 0.10.0
libtpu: 0.0.40
codegen_flags: <defaults>
</compile_context>

<pallas_src>
import jax
import jax.numpy as jnp
from jax import lax
from jax.experimental import pallas as pl
from jax.experimental.pallas import tpu as pltpu


def net_kernel(
    ue_ref, ie_ref,          # embeddings:        [Nu, D], [Ni, D]
    ugs_ref, igs_ref,        # GraphSAGE graphs:  [Nu, Nu], [Ni, Ni]
    pu_ref, pi_ref,          # folded HGNN props: [Nu, Nu], [Ni, Ni]  (= (Gh+I)^2)
    wnu_ref, wru_ref, bu_ref,  # user SAGE params: [D, H], [D, H], [1, H]
    wni_ref, wri_ref, bi_ref,  # item SAGE params: [D, H], [D, H], [1, H]
    out_ref,                 # predicted ratings  [Nu, Ni]
):
    f32 = jnp.float32

    # ---------------- user branch ----------------
    ue = ue_ref[...]
    u_neigh = jnp.dot(ugs_ref[...], ue, preferred_element_type=f32)           # Gs @ x
    uz1 = (jnp.dot(u_neigh, wnu_ref[...], preferred_element_type=f32)
           + jnp.dot(ue, wru_ref[...], preferred_element_type=f32)
           + bu_ref[...])                                                     # SAGEConv
    uz = jnp.dot(pu_ref[...], uz1, preferred_element_type=f32)                # (Gh+I)^2 @ z1

    # ---------------- item branch ----------------
    ie = ie_ref[...]
    i_neigh = jnp.dot(igs_ref[...], ie, preferred_element_type=f32)
    iz1 = (jnp.dot(i_neigh, wni_ref[...], preferred_element_type=f32)
           + jnp.dot(ie, wri_ref[...], preferred_element_type=f32)
           + bi_ref[...])
    iz = jnp.dot(pi_ref[...], iz1, preferred_element_type=f32)

    # ------------- prediction: user_z @ item_z.T (no explicit transpose) -------------
    out_ref[...] = lax.dot_general(
        uz, iz,
        dimension_numbers=(((1,), (1,)), ((), ())),
        preferred_element_type=f32,
    )


def net_forward(user_emb, item_emb, user_Gs, item_Gs, user_Gh, item_Gh,
                w_root_u, w_neigh_u, b_u, w_root_i, w_neigh_i, b_i):
    Nu, D = user_emb.shape
    Ni, _ = item_emb.shape

    # One-time XLA precompute: fold the two HGNN residual hops,
    #   z -> Gh@z + z applied twice  ==  (Gh + I)^2 @ z  ==  (Gh@Gh + 2*Gh + I) @ z
    P_u = user_Gh @ user_Gh + 2.0 * user_Gh + jnp.eye(Nu, dtype=jnp.float32)
    P_i = item_Gh @ item_Gh + 2.0 * item_Gh + jnp.eye(Ni, dtype=jnp.float32)

    args = (user_emb, item_emb, user_Gs, item_Gs, P_u, P_i,
            w_neigh_u, w_root_u, b_u, w_neigh_i, w_root_i, b_i)

    # Tiny problem (~50 KiB total): grid-less call, every operand a full-array VMEM block.
    in_specs = [pl.BlockSpec(memory_space=pltpu.MemorySpace.VMEM) for _ in args]
    out_spec = pl.BlockSpec(memory_space=pltpu.MemorySpace.VMEM)

    return pl.pallas_call(
        net_kernel,
        out_shape=jax.ShapeDtypeStruct((Nu, Ni), jnp.float32),
        in_specs=in_specs,
        out_specs=out_spec,
    )(*args)


def reference_forward(user_emb, item_emb, user_Gs, item_Gs, user_Gh, item_Gh,
                      w_root_u, w_neigh_u, b_u, w_root_i, w_neigh_i, b_i):
    # Unfused f32 reference matching the PyTorch module semantics exactly.
    uz1 = (user_Gs @ user_emb) @ w_neigh_u + user_emb @ w_root_u + b_u
    iz1 = (item_Gs @ item_emb) @ w_neigh_i + item_emb @ w_root_i + b_i
    uz = user_Gh @ uz1 + uz1
    uz = user_Gh @ uz + uz
    iz = item_Gh @ iz1 + iz1
    iz = item_Gh @ iz + iz
    return uz @ iz.T


if __name__ == "__main__":
    # Small shapes consistent with the module (emb_dim == hid_dim == 64).
    num_users, num_items = 32, 24
    emb_dim = hid_dim = 64

    key = jax.random.PRNGKey(0)
    keys = jax.random.split(key, 12)

    def xavier_normal(k, fan_in, fan_out):
        std = (2.0 / (fan_in + fan_out)) ** 0.5
        return std * jax.random.normal(k, (fan_in, fan_out), dtype=jnp.float32)

    # Parameters (deterministic synthetic init, mirroring __init__ shapes).
    user_emb = xavier_normal(keys[0], num_users, emb_dim)
    item_emb = xavier_normal(keys[1], num_items, emb_dim)
    w_root_u = xavier_normal(keys[2], emb_dim, hid_dim)
    w_neigh_u = xavier_normal(keys[3], emb_dim, hid_dim)
    b_u = 0.01 * jax.random.normal(keys[4], (1, hid_dim), dtype=jnp.float32)
    w_root_i = xavier_normal(keys[5], emb_dim, hid_dim)
    w_neigh_i = xavier_normal(keys[6], emb_dim, hid_dim)
    b_i = 0.01 * jax.random.normal(keys[7], (1, hid_dim), dtype=jnp.float32)
    # NOTE: HGNN_conv.weight / .bias are created in __init__ but unused in forward.

    # Dense graphs: random adjacency, row-normalized (mean-style propagation).
    def make_graph(k, n):
        a = (jax.random.uniform(k, (n, n)) < 0.3).astype(jnp.float32)
        a = a + jnp.eye(n, dtype=jnp.float32)
        return a / jnp.sum(a, axis=-1, keepdims=True)

    user_Gs = make_graph(keys[8], num_users)
    item_Gs = make_graph(keys[9], num_items)
    user_Gh = make_graph(keys[10], num_users)
    item_Gh = make_graph(keys[11], num_items)

    args = (user_emb, item_emb, user_Gs, item_Gs, user_Gh, item_Gh,
            w_root_u, w_neigh_u, b_u, w_root_i, w_neigh_i, b_i)

    pred = net_forward(*args)
    pred = jax.block_until_ready(pred)

    ref = reference_forward(*args)
    assert pred.shape == (num_users, num_items)
    assert jnp.allclose(pred, ref, atol=1e-4, rtol=1e-4)

    print("KERNEL_OK")
</pallas_src>

<mosaic_0001>
module attributes {stable_mosaic.version = 11 : i64} {
  func.func @net_kernel(%arg0: memref<32x64xf32, #tpu.memory_space<vmem>>, %arg1: memref<24x64xf32, #tpu.memory_space<vmem>>, %arg2: memref<32x32xf32, #tpu.memory_space<vmem>>, %arg3: memref<24x24xf32, #tpu.memory_space<vmem>>, %arg4: memref<32x32xf32, #tpu.memory_space<vmem>>, %arg5: memref<24x24xf32, #tpu.memory_space<vmem>>, %arg6: memref<64x64xf32, #tpu.memory_space<vmem>>, %arg7: memref<64x64xf32, #tpu.memory_space<vmem>>, %arg8: memref<1x64xf32, #tpu.memory_space<vmem>>, %arg9: memref<64x64xf32, #tpu.memory_space<vmem>>, %arg10: memref<64x64xf32, #tpu.memory_space<vmem>>, %arg11: memref<1x64xf32, #tpu.memory_space<vmem>>, %arg12: memref<32x24xf32, #tpu.memory_space<vmem>>) attributes {dimension_semantics = [], scalar_prefetch = 0 : i64, scratch_operands = 0 : i64, tpu.core_type = #tpu.core_type<tc>} {
    %c0 = arith.constant 0 : index
    %c0_0 = arith.constant 0 : index
    %0 = vector.load %arg0[%c0, %c0_0] : memref<32x64xf32, #tpu.memory_space<vmem>>, vector<32x64xf32>
    %c0_1 = arith.constant 0 : index
    %c0_2 = arith.constant 0 : index
    %1 = vector.load %arg2[%c0_1, %c0_2] : memref<32x32xf32, #tpu.memory_space<vmem>>, vector<32x32xf32>
    %cst = arith.constant dense<0.000000e+00> : vector<32x64xf32>
    %2 = tpu.matmul %1, %0, %cst {dimension_numbers = #tpu.dot_dimension_numbers<[1], [0], [0], [1], [0, 0, 1, 1], [], []>} : vector<32x32xf32>, vector<32x64xf32>, vector<32x64xf32> -> vector<32x64xf32>
    %c0_3 = arith.constant 0 : index
    %c0_4 = arith.constant 0 : index
    %3 = vector.load %arg6[%c0_3, %c0_4] : memref<64x64xf32, #tpu.memory_space<vmem>>, vector<64x64xf32>
    %cst_5 = arith.constant dense<0.000000e+00> : vector<32x64xf32>
    %4 = tpu.matmul %2, %3, %cst_5 {dimension_numbers = #tpu.dot_dimension_numbers<[1], [0], [0], [1], [0, 0, 1, 1], [], []>} : vector<32x64xf32>, vector<64x64xf32>, vector<32x64xf32> -> vector<32x64xf32>
    %c0_6 = arith.constant 0 : index
    %c0_7 = arith.constant 0 : index
    %5 = vector.load %arg7[%c0_6, %c0_7] : memref<64x64xf32, #tpu.memory_space<vmem>>, vector<64x64xf32>
    %cst_8 = arith.constant dense<0.000000e+00> : vector<32x64xf32>
    %6 = tpu.matmul %0, %5, %cst_8 {dimension_numbers = #tpu.dot_dimension_numbers<[1], [0], [0], [1], [0, 0, 1, 1], [], []>} : vector<32x64xf32>, vector<64x64xf32>, vector<32x64xf32> -> vector<32x64xf32>
    %7 = arith.addf %4, %6 : vector<32x64xf32>
    %c0_9 = arith.constant 0 : index
    %c0_10 = arith.constant 0 : index
    %8 = vector.load %arg8[%c0_9, %c0_10] : memref<1x64xf32, #tpu.memory_space<vmem>>, vector<1x64xf32>
    %9 = vector.broadcast %8 : vector<1x64xf32> to vector<32x64xf32>
    %10 = arith.addf %7, %9 : vector<32x64xf32>
    %c0_11 = arith.constant 0 : index
    %c0_12 = arith.constant 0 : index
    %11 = vector.load %arg4[%c0_11, %c0_12] : memref<32x32xf32, #tpu.memory_space<vmem>>, vector<32x32xf32>
    %cst_13 = arith.constant dense<0.000000e+00> : vector<32x64xf32>
    %12 = tpu.matmul %11, %10, %cst_13 {dimension_numbers = #tpu.dot_dimension_numbers<[1], [0], [0], [1], [0, 0, 1, 1], [], []>} : vector<32x32xf32>, vector<32x64xf32>, vector<32x64xf32> -> vector<32x64xf32>
    %c0_14 = arith.constant 0 : index
    %c0_15 = arith.constant 0 : index
    %13 = vector.load %arg1[%c0_14, %c0_15] : memref<24x64xf32, #tpu.memory_space<vmem>>, vector<24x64xf32>
    %c0_16 = arith.constant 0 : index
    %c0_17 = arith.constant 0 : index
    %14 = vector.load %arg3[%c0_16, %c0_17] : memref<24x24xf32, #tpu.memory_space<vmem>>, vector<24x24xf32>
    %cst_18 = arith.constant dense<0.000000e+00> : vector<24x64xf32>
    %15 = tpu.matmul %14, %13, %cst_18 {dimension_numbers = #tpu.dot_dimension_numbers<[1], [0], [0], [1], [0, 0, 1, 1], [], []>} : vector<24x24xf32>, vector<24x64xf32>, vector<24x64xf32> -> vector<24x64xf32>
    %c0_19 = arith.constant 0 : index
    %c0_20 = arith.constant 0 : index
    %16 = vector.load %arg9[%c0_19, %c0_20] : memref<64x64xf32, #tpu.memory_space<vmem>>, vector<64x64xf32>
    %cst_21 = arith.constant dense<0.000000e+00> : vector<24x64xf32>
    %17 = tpu.matmul %15, %16, %cst_21 {dimension_numbers = #tpu.dot_dimension_numbers<[1], [0], [0], [1], [0, 0, 1, 1], [], []>} : vector<24x64xf32>, vector<64x64xf32>, vector<24x64xf32> -> vector<24x64xf32>
    %c0_22 = arith.constant 0 : index
    %c0_23 = arith.constant 0 : index
    %18 = vector.load %arg10[%c0_22, %c0_23] : memref<64x64xf32, #tpu.memory_space<vmem>>, vector<64x64xf32>
    %cst_24 = arith.constant dense<0.000000e+00> : vector<24x64xf32>
    %19 = tpu.matmul %13, %18, %cst_24 {dimension_numbers = #tpu.dot_dimension_numbers<[1], [0], [0], [1], [0, 0, 1, 1], [], []>} : vector<24x64xf32>, vector<64x64xf32>, vector<24x64xf32> -> vector<24x64xf32>
    %20 = arith.addf %17, %19 : vector<24x64xf32>
    %c0_25 = arith.constant 0 : index
    %c0_26 = arith.constant 0 : index
    %21 = vector.load %arg11[%c0_25, %c0_26] : memref<1x64xf32, #tpu.memory_space<vmem>>, vector<1x64xf32>
    %22 = vector.broadcast %21 : vector<1x64xf32> to vector<24x64xf32>
    %23 = arith.addf %20, %22 : vector<24x64xf32>
    %c0_27 = arith.constant 0 : index
    %c0_28 = arith.constant 0 : index
    %24 = vector.load %arg5[%c0_27, %c0_28] : memref<24x24xf32, #tpu.memory_space<vmem>>, vector<24x24xf32>
    %cst_29 = arith.constant dense<0.000000e+00> : vector<24x64xf32>
    %25 = tpu.matmul %24, %23, %cst_29 {dimension_numbers = #tpu.dot_dimension_numbers<[1], [0], [0], [1], [0, 0, 1, 1], [], []>} : vector<24x24xf32>, vector<24x64xf32>, vector<24x64xf32> -> vector<24x64xf32>
    %cst_30 = arith.constant dense<0.000000e+00> : vector<32x24xf32>
    %26 = tpu.matmul %12, %25, %cst_30 {dimension_numbers = #tpu.dot_dimension_numbers<[1], [1], [0], [0], [0, 0, 1, 0], [], []>} : vector<32x64xf32>, vector<24x64xf32>, vector<32x24xf32> -> vector<32x24xf32>
    %c0_31 = arith.constant 0 : index
    %c0_32 = arith.constant 0 : index
    %27 = vector.load %arg12[%c0_31, %c0_32] : memref<32x24xf32, #tpu.memory_space<vmem>>, vector<32x24xf32>
    tpu.vector_store %arg12[%c0_31, %c0_32], %26 {strides = array<i32>} : memref<32x24xf32, #tpu.memory_space<vmem>>, vector<32x24xf32>,
    return
  }
}

</mosaic_0001>

<llo_original>
// kernel: tpu_custom_call.1
$region0: #{tpu_custom_call.1}
  #allocation0 [shape = 'u32[]', space=smem, size = 0x4, offset = 0x4, fixed_abs, tag = 'smem constant byte address 0x4 - core index']
  #allocation1 [shape = 'u32[72,128]{1,0:T(1,128)}', space=vmem, size = 0x9000, scoped, tag = 'internal scratch']
  %s0 = inlined_call_operand.hbm [shape: f32[32,64], index: 0, kind: input, shape index: {}]
  %s1 = inlined_call_operand.hbm [shape: f32[24,64], index: 1, kind: input, shape index: {}]
  %s2 = inlined_call_operand.hbm [shape: f32[32,32], index: 2, kind: input, shape index: {}]
  %s3 = inlined_call_operand.hbm [shape: f32[24,24], index: 3, kind: input, shape index: {}]
  %s4 = inlined_call_operand.hbm [shape: f32[32,32], index: 4, kind: input, shape index: {}]
  %s5 = inlined_call_operand.hbm [shape: f32[24,24], index: 5, kind: input, shape index: {}]
  %s6 = inlined_call_operand.hbm [shape: f32[64,64], index: 6, kind: input, shape index: {}]
  %s7 = inlined_call_operand.hbm [shape: f32[64,64], index: 7, kind: input, shape index: {}]
  %s8 = inlined_call_operand.vmem [shape: f32[1,64], index: 8, kind: input, shape index: {}]
  %s9 = inlined_call_operand.hbm [shape: f32[64,64], index: 9, kind: input, shape index: {}]
  %s10 = inlined_call_operand.hbm [shape: f32[64,64], index: 10, kind: input, shape index: {}]
  %s11 = inlined_call_operand.vmem [shape: f32[1,64], index: 11, kind: input, shape index: {}]
  %s12 = inlined_call_operand.vmem [shape: f32[32,24], index: 12, kind: output, shape index: {}]
  %s13 = sld [smem:[#allocation0]]
  $region98: #{tpu_custom_call.1} parent=0
    _
  %s15 = ssub.s32 1, %s13
  %s16 = scalar_select 0, %s15, %s13
  $region1: #{tpu_custom_call.1} parent=0
    #allocation2 [shape = 'u8[16384]{0}', space=vmem, size = 0x4000, scoped, tag = 'input window, operand 0, single buffered']
    #allocation3 [shape = 's32[1]{0}', space=sflag, size = 0x4, scoped, tag = 'scoped memory for tpu_custom_call.1']
    #allocation4 [shape = 'u8[12288]{0}', space=vmem, size = 0x3000, scoped, tag = 'input window, operand 1, single buffered']
    #allocation5 [shape = 's32[1]{0}', space=sflag, size = 0x4, scoped, tag = 'scoped memory for tpu_custom_call.1']
    #allocation6 [shape = 'u8[16384]{0}', space=vmem, size = 0x4000, scoped, tag = 'input window, operand 2, single buffered']
    #allocation7 [shape = 'u8[12288]{0}', space=vmem, size = 0x3000, scoped, tag = 'input window, operand 3, single buffered']
    #allocation8 [shape = 's32[1]{0}', space=sflag, size = 0x4, scoped, tag = 'scoped memory for tpu_custom_call.1']
    #allocation9 [shape = 'u8[16384]{0}', space=vmem, size = 0x4000, scoped, tag = 'input window, operand 4, single buffered']
    #allocation10 [shape = 'u8[12288]{0}', space=vmem, size = 0x3000, scoped, tag = 'input window, operand 5, single buffered']
    #allocation11 [shape = 's32[1]{0}', space=sflag, size = 0x4, scoped, tag = 'scoped memory for tpu_custom_call.1']
    #allocation12 [shape = 'u8[32768]{0}', space=vmem, size = 0x8000, scoped, tag = 'input window, operand 6, single buffered']
    #allocation13 [shape = 'u8[32768]{0}', space=vmem, size = 0x8000, scoped, tag = 'input window, operand 7, single buffered']
    #allocation14 [shape = 's32[1]{0}', space=sflag, size = 0x4, scoped, tag = 'scoped memory for tpu_custom_call.1']
    #allocation15 [shape = 'u8[32768]{0}', space=vmem, size = 0x8000, scoped, tag = 'input window, operand 9, single buffered']
    #allocation16 [shape = 'u8[32768]{0}', space=vmem, size = 0x8000, scoped, tag = 'input window, operand 10, single buffered']
    #allocation17 [shape = 's32[1]{0}', space=sflag, size = 0x4, scoped, tag = 'scoped memory for tpu_custom_call.1']
    %17 = vsyncpa [#allocation3], 0
    %18 = vsyncpa [#allocation5], 0
    %19 = vsyncpa [#allocation8], 0
    %20 = vsyncpa [#allocation11], 0
    %21 = vsyncpa [#allocation14], 0
    %22 = vsyncpa [#allocation17], 0
    // Predicated region
    $region2: #{tpu_custom_call.1} parent=1 // pred_check
      _
    $region3: #{tpu_custom_call.1} parent=1 // pred_check_branch
      %24 = sbr.rel (0) target = $region5
    $region4: #{tpu_custom_call.1} parent=1 // pred_region
      %26 = vsyncadd [#allocation3], 0
      %s27 = sshll.u32 %s0, 4
      %s28 = int_to_ptr.hbm [resolvable:$true] %s27
      %s29 = sshll.u32 [#allocation2], 4
      %s30 = int_to_ptr.vmem [resolvable:$true] %s29
      %35 = dma.hbm_to_vmem [thread:$0]  %s28, 512, %s30, [#allocation3], 128, 128, 8
    $region5: #{tpu_custom_call.1} parent=1 // pred_fallthru
      _
    // Predicated region
    $region6: #{tpu_custom_call.1} parent=1 // pred_check
      _
    $region7: #{tpu_custom_call.1} parent=1 // pred_check_branch
      %37 = sbr.rel (0) target = $region9
    $region8: #{tpu_custom_call.1} parent=1 // pred_region
      %39 = vsyncadd [#allocation5], 0
      %s40 = sshll.u32 %s1, 4
      %s41 = int_to_ptr.hbm [resolvable:$true] %s40
      %s42 = sshll.u32 [#allocation4], 4
      %s43 = int_to_ptr.vmem [resolvable:$true] %s42
      %48 = dma.hbm_to_vmem [thread:$0]  %s41, 384, %s43, [#allocation5], 128, 128, 8
    $region9: #{tpu_custom_call.1} parent=1 // pred_fallthru
      _
    // Predicated region
    $region10: #{tpu_custom_call.1} parent=1 // pred_check
      _
    $region11: #{tpu_custom_call.1} parent=1 // pred_check_branch
      %50 = sbr.rel (0) target = $region13
    $region12: #{tpu_custom_call.1} parent=1 // pred_region
      %52 = vsyncadd [#allocation5], 0
      %s53 = sshll.u32 %s2, 4
      %s54 = int_to_ptr.hbm [resolvable:$true] %s53
      %s55 = sshll.u32 [#allocation6], 4
      %s56 = int_to_ptr.vmem [resolvable:$true] %s55
      %61 = dma.hbm_to_vmem [thread:$0]  %s54, 512, %s56, [#allocation5], 128, 128, 8
    $region13: #{tpu_custom_call.1} parent=1 // pred_fallthru
      _
    // Predicated region
    $region14: #{tpu_custom_call.1} parent=1 // pred_check
      _
    $region15: #{tpu_custom_call.1} parent=1 // pred_check_branch
      %63 = sbr.rel (0) target = $region17
    $region16: #{tpu_custom_call.1} parent=1 // pred_region
      %65 = vsyncadd [#allocation8], 0
      %s66 = sshll.u32 %s3, 4
      %s67 = int_to_ptr.hbm [resolvable:$true] %s66
      %s68 = sshll.u32 [#allocation7], 4
      %s69 = int_to_ptr.vmem [resolvable:$true] %s68
      %74 = dma.hbm_to_vmem [thread:$0]  %s67, 384, %s69, [#allocation8], 128, 128, 8
    $region17: #{tpu_custom_call.1} parent=1 // pred_fallthru
      _
    // Predicated region
    $region18: #{tpu_custom_call.1} parent=1 // pred_check
      _
    $region19: #{tpu_custom_call.1} parent=1 // pred_check_branch
      %76 = sbr.rel (0) target = $region21
    $region20: #{tpu_custom_call.1} parent=1 // pred_region
      %78 = vsyncadd [#allocation8], 0
      %s79 = sshll.u32 %s4, 4
      %s80 = int_to_ptr.hbm [resolvable:$true] %s79
      %s81 = sshll.u32 [#allocation9], 4
      %s82 = int_to_ptr.vmem [resolvable:$true] %s81
      %87 = dma.hbm_to_vmem [thread:$0]  %s80, 512, %s82, [#allocation8], 128, 128, 8
    $region21: #{tpu_custom_call.1} parent=1 // pred_fallthru
      _
    // Predicated region
    $region22: #{tpu_custom_call.1} parent=1 // pred_check
      _
    $region23: #{tpu_custom_call.1} parent=1 // pred_check_branch
      %89 = sbr.rel (0) target = $region25
    $region24: #{tpu_custom_call.1} parent=1 // pred_region
      %91 = vsyncadd [#allocation11], 0
      %s92 = sshll.u32 %s5, 4
      %s93 = int_to_ptr.hbm [resolvable:$true] %s92
      %s94 = sshll.u32 [#allocation10], 4
      %s95 = int_to_ptr.vmem [resolvable:$true] %s94
      %100 = dma.hbm_to_vmem [thread:$0]  %s93, 384, %s95, [#allocation11], 128, 128, 8
    $region25: #{tpu_custom_call.1} parent=1 // pred_fallthru
      _
    // Predicated region
    $region26: #{tpu_custom_call.1} parent=1 // pred_check
      _
    $region27: #{tpu_custom_call.1} parent=1 // pred_check_branch
      %102 = sbr.rel (0) target = $region29
    $region28: #{tpu_custom_call.1} parent=1 // pred_region
      %104 = vsyncadd [#allocation11], 0
      %s105 = sshll.u32 %s6, 4
      %s106 = int_to_ptr.hbm [resolvable:$true] %s105
      %s107 = sshll.u32 [#allocation12], 4
      %s108 = int_to_ptr.vmem [resolvable:$true] %s107
      %113 = dma.hbm_to_vmem [thread:$0]  %s106, 1024, %s108, [#allocation11], 128, 128, 8
    $region29: #{tpu_custom_call.1} parent=1 // pred_fallthru
      _
    // Predicated region
    $region30: #{tpu_custom_call.1} parent=1 // pred_check
      _
    $region31: #{tpu_custom_call.1} parent=1 // pred_check_branch
      %115 = sbr.rel (0) target = $region33
    $region32: #{tpu_custom_call.1} parent=1 // pred_region
      %117 = vsyncadd [#allocation14], 0
      %s118 = sshll.u32 %s7, 4
      %s119 = int_to_ptr.hbm [resolvable:$true] %s118
      %s120 = sshll.u32 [#allocation13], 4
      %s121 = int_to_ptr.vmem [resolvable:$true] %s120
      %126 = dma.hbm_to_vmem [thread:$0]  %s119, 1024, %s121, [#allocation14], 128, 128, 8
    $region33: #{tpu_custom_call.1} parent=1 // pred_fallthru
      _
    // Predicated region
    $region34: #{tpu_custom_call.1} parent=1 // pred_check
      _
    $region35: #{tpu_custom_call.1} parent=1 // pred_check_branch
      %128 = sbr.rel (0) target = $region37
    $region36: #{tpu_custom_call.1} parent=1 // pred_region
      _
    $region37: #{tpu_custom_call.1} parent=1 // pred_fallthru
      _
    // Predicated region
    $region38: #{tpu_custom_call.1} parent=1 // pred_check
      _
    $region39: #{tpu_custom_call.1} parent=1 // pred_check_branch
      %130 = sbr.rel (0) target = $region41
    $region40: #{tpu_custom_call.1} parent=1 // pred_region
      %132 = vsyncadd [#allocation14], 0
      %s133 = sshll.u32 %s9, 4
      %s134 = int_to_ptr.hbm [resolvable:$true] %s133
      %s135 = sshll.u32 [#allocation15], 4
      %s136 = int_to_ptr.vmem [resolvable:$true] %s135
      %141 = dma.hbm_to_vmem [thread:$0]  %s134, 1024, %s136, [#allocation14], 128, 128, 8
    $region41: #{tpu_custom_call.1} parent=1 // pred_fallthru
      _
    // Predicated region
    $region42: #{tpu_custom_call.1} parent=1 // pred_check
      _
    $region43: #{tpu_custom_call.1} parent=1 // pred_check_branch
      %143 = sbr.rel (0) target = $region45
    $region44: #{tpu_custom_call.1} parent=1 // pred_region
      %145 = vsyncadd [#allocation17], 0
      %s146 = sshll.u32 %s10, 4
      %s147 = int_to_ptr.hbm [resolvable:$true] %s146
      %s148 = sshll.u32 [#allocation16], 4
      %s149 = int_to_ptr.vmem [resolvable:$true] %s148
      %154 = dma.hbm_to_vmem [thread:$0]  %s147, 1024, %s149, [#allocation17], 128, 128, 8
    $region45: #{tpu_custom_call.1} parent=1 // pred_fallthru
      _
    // Predicated region
    $region46: #{tpu_custom_call.1} parent=1 // pred_check
      _
    $region47: #{tpu_custom_call.1} parent=1 // pred_check_branch
      %156 = sbr.rel (0) target = $region49
    $region48: #{tpu_custom_call.1} parent=1 // pred_region
      _
    $region49: #{tpu_custom_call.1} parent=1 // pred_fallthru
      _
    // Predicated region
    $region50: #{tpu_custom_call.1} parent=1 // pred_check
      _
    $region51: #{tpu_custom_call.1} parent=1 // pred_check_branch
      %158 = sbr.rel (0) target = $region53
    $region52: #{tpu_custom_call.1} parent=1 // pred_region
      %160 = dma.done [#allocation3], 512
    $region53: #{tpu_custom_call.1} parent=1 // pred_fallthru
      _
    // Predicated region
    $region54: #{tpu_custom_call.1} parent=1 // pred_check
      _
    $region55: #{tpu_custom_call.1} parent=1 // pred_check_branch
      %162 = sbr.rel (0) target = $region57
    $region56: #{tpu_custom_call.1} parent=1 // pred_region
      %164 = dma.done [#allocation5], 384
    $region57: #{tpu_custom_call.1} parent=1 // pred_fallthru
      _
    // Predicated region
    $region58: #{tpu_custom_call.1} parent=1 // pred_check
      _
    $region59: #{tpu_custom_call.1} parent=1 // pred_check_branch
      %166 = sbr.rel (0) target = $region61
    $region60: #{tpu_custom_call.1} parent=1 // pred_region
      %168 = dma.done [#allocation5], 512
    $region61: #{tpu_custom_call.1} parent=1 // pred_fallthru
      _
    // Predicated region
    $region62: #{tpu_custom_call.1} parent=1 // pred_check
      _
    $region63: #{tpu_custom_call.1} parent=1 // pred_check_branch
      %170 = sbr.rel (0) target = $region65
    $region64: #{tpu_custom_call.1} parent=1 // pred_region
      %172 = dma.done [#allocation8], 384
    $region65: #{tpu_custom_call.1} parent=1 // pred_fallthru
      _
    // Predicated region
    $region66: #{tpu_custom_call.1} parent=1 // pred_check
      _
    $region67: #{tpu_custom_call.1} parent=1 // pred_check_branch
      %174 = sbr.rel (0) target = $region69
    $region68: #{tpu_custom_call.1} parent=1 // pred_region
      %176 = dma.done [#allocation8], 512
    $region69: #{tpu_custom_call.1} parent=1 // pred_fallthru
      _
    // Predicated region
    $region70: #{tpu_custom_call.1} parent=1 // pred_check
      _
    $region71: #{tpu_custom_call.1} parent=1 // pred_check_branch
      %178 = sbr.rel (0) target = $region73
    $region72: #{tpu_custom_call.1} parent=1 // pred_region
      %180 = dma.done [#allocation11], 384
    $region73: #{tpu_custom_call.1} parent=1 // pred_fallthru
      _
    // Predicated region
    $region74: #{tpu_custom_call.1} parent=1 // pred_check
      _
    $region75: #{tpu_custom_call.1} parent=1 // pred_check_branch
      %182 = sbr.rel (0) target = $region77
    $region76: #{tpu_custom_call.1} parent=1 // pred_region
      %184 = dma.done [#allocation11], 1024
    $region77: #{tpu_custom_call.1} parent=1 // pred_fallthru
      _
    // Predicated region
    $region78: #{tpu_custom_call.1} parent=1 // pred_check
      _
    $region79: #{tpu_custom_call.1} parent=1 // pred_check_branch
      %186 = sbr.rel (0) target = $region81
    $region80: #{tpu_custom_call.1} parent=1 // pred_region
      %188 = dma.done [#allocation14], 1024
    $region81: #{tpu_custom_call.1} parent=1 // pred_fallthru
      _
    // Predicated region
    $region82: #{tpu_custom_call.1} parent=1 // pred_check
      _
    $region83: #{tpu_custom_call.1} parent=1 // pred_check_branch
      %190 = sbr.rel (0) target = $region85
    $region84: #{tpu_custom_call.1} parent=1 // pred_region
      %192 = dma.done [#allocation14], 1024
    $region85: #{tpu_custom_call.1} parent=1 // pred_fallthru
      _
    // Predicated region
    $region86: #{tpu_custom_call.1} parent=1 // pred_check
      _
    $region87: #{tpu_custom_call.1} parent=1 // pred_check_branch
      %194 = sbr.rel (0) target = $region89
    $region88: #{tpu_custom_call.1} parent=1 // pred_region
      %196 = dma.done [#allocation17], 1024
    $region89: #{tpu_custom_call.1} parent=1 // pred_fallthru
      _
    %v197 = vld [vmem:[#allocation2] sm:$0xff]
    %v198 = vld [vmem:[#allocation2 + $0x8] sm:$0xff]
    %v199 = vld [vmem:[#allocation2 + $0x10] sm:$0xff]
    %v200 = vld [vmem:[#allocation2 + $0x18] sm:$0xff]
    %v201 = vld [vmem:[#allocation6] sm:$0xff]
    %v202 = vld [vmem:[#allocation6 + $0x8] sm:$0xff]
    %v203 = vld [vmem:[#allocation6 + $0x10] sm:$0xff]
    %v204 = vld [vmem:[#allocation6 + $0x18] sm:$0xff]
    %vm205 = vcmask 261120
    %v207 = vsel %vm205, %v201, 0
    %v210 = vsel %vm205, %v202, 0
    %v213 = vsel %vm205, %v203, 0
    %v216 = vsel %vm205, %v204, 0
    %218 = vmatpush.msra.mxu0 0.0
    %219 = vmatpush.msra.mxu0 0.0
    %220 = vmatpush.msra.mxu0 0.0
    %221 = vmatpush.msra.mxu0 0.0
    %222 = vmatpush.msra.mxu0 0.0
    %223 = vmatpush.msra.mxu0 0.0
    %224 = vmatpush.msra.mxu0 0.0
    %225 = vmatpush.msra.mxu0 0.0
    %226 = vmatpush.msra.mxu0 0.0
    %227 = vmatpush.msra.mxu0 0.0
    %228 = vmatpush.msra.mxu0 0.0
    %229 = vmatpush.msra.mxu0 0.0
    %230 = vmatpush.msra.mxu0 %v200
    %231 = vmatpush.msra.mxu0 %v199
    %232 = vmatpush.msra.mxu0 %v198
    %233 = vmatpush.msra.mxu0 %v197
    %234 = vmatmul.f32.gmra.mxu0 %v207
    %v235 = vpop.f32.mrf.mxu0
    %v236 = vadd.f32 0.0, %v235
    %237 = vmatmul.f32.gmra.mxu0 %v210
    %v238 = vpop.f32.mrf.mxu0
    %v239 = vadd.f32 0.0, %v238
    %240 = vmatmul.f32.gmra.mxu0 %v213
    %v241 = vpop.f32.mrf.mxu0
    %v242 = vadd.f32 0.0, %v241
    %243 = vmatmul.f32.gmra.mxu0 %v216
    %v244 = vpop.f32.mrf.mxu0
    %v245 = vadd.f32 0.0, %v244
    %246 = vdwg.mxu0
    %v247 = vld [vmem:[#allocation12] sm:$0xff]
    %v248 = vld [vmem:[#allocation12 + $0x8] sm:$0xff]
    %v249 = vld [vmem:[#allocation12 + $0x10] sm:$0xff]
    %v250 = vld [vmem:[#allocation12 + $0x18] sm:$0xff]
    %v251 = vld [vmem:[#allocation12 + $0x20] sm:$0xff]
    %v252 = vld [vmem:[#allocation12 + $0x28] sm:$0xff]
    %v253 = vld [vmem:[#allocation12 + $0x30] sm:$0xff]
    %v254 = vld [vmem:[#allocation12 + $0x38] sm:$0xff]
    %v255 = vld [vmem:[#allocation13] sm:$0xff]
    %v256 = vld [vmem:[#allocation13 + $0x8] sm:$0xff]
    %v257 = vld [vmem:[#allocation13 + $0x10] sm:$0xff]
    %v258 = vld [vmem:[#allocation13 + $0x18] sm:$0xff]
    %v259 = vld [vmem:[#allocation13 + $0x20] sm:$0xff]
    %v260 = vld [vmem:[#allocation13 + $0x28] sm:$0xff]
    %v261 = vld [vmem:[#allocation13 + $0x30] sm:$0xff]
    %v262 = vld [vmem:[#allocation13 + $0x38] sm:$0xff]
    %vm263 = vcmask 523264
    %v265 = vsel %vm263, %v197, 0
    %v268 = vsel %vm263, %v198, 0
    %v271 = vsel %vm263, %v199, 0
    %v274 = vsel %vm263, %v200, 0
    %276 = vmatpush.msra.mxu0 0.0
    %277 = vmatpush.msra.mxu0 0.0
    %278 = vmatpush.msra.mxu0 0.0
    %279 = vmatpush.msra.mxu0 0.0
    %280 = vmatpush.msra.mxu0 0.0
    %281 = vmatpush.msra.mxu0 0.0
    %282 = vmatpush.msra.mxu0 0.0
    %283 = vmatpush.msra.mxu0 0.0
    %284 = vmatpush.msra.mxu0 %v262
    %285 = vmatpush.msra.mxu0 %v261
    %286 = vmatpush.msra.mxu0 %v260
    %287 = vmatpush.msra.mxu0 %v259
    %288 = vmatpush.msra.mxu0 %v258
    %289 = vmatpush.msra.mxu0 %v257
    %290 = vmatpush.msra.mxu0 %v256
    %291 = vmatpush.msra.mxu0 %v255
    %292 = vmatmul.f32.gmra.mxu0 %v265
    %v293 = vpop.f32.mrf.mxu0
    %v294 = vadd.f32 0.0, %v293
    %295 = vmatmul.f32.gmra.mxu0 %v268
    %v296 = vpop.f32.mrf.mxu0
    %v297 = vadd.f32 0.0, %v296
    %298 = vmatmul.f32.gmra.mxu0 %v271
    %v299 = vpop.f32.mrf.mxu0
    %v300 = vadd.f32 0.0, %v299
    %301 = vmatmul.f32.gmra.mxu0 %v274
    %v302 = vpop.f32.mrf.mxu0
    %v303 = vadd.f32 0.0, %v302
    %304 = vdwg.mxu0
    %v306 = vsel %vm263, %v236, 0
    %v309 = vsel %vm263, %v239, 0
    %v312 = vsel %vm263, %v242, 0
    %v315 = vsel %vm263, %v245, 0
    %317 = vmatpush.msra.mxu0 0.0
    %318 = vmatpush.msra.mxu0 0.0
    %319 = vmatpush.msra.mxu0 0.0
    %320 = vmatpush.msra.mxu0 0.0
    %321 = vmatpush.msra.mxu0 0.0
    %322 = vmatpush.msra.mxu0 0.0
    %323 = vmatpush.msra.mxu0 0.0
    %324 = vmatpush.msra.mxu0 0.0
    %325 = vmatpush.msra.mxu0 %v254
    %326 = vmatpush.msra.mxu0 %v253
    %327 = vmatpush.msra.mxu0 %v252
    %328 = vmatpush.msra.mxu0 %v251
    %329 = vmatpush.msra.mxu0 %v250
    %330 = vmatpush.msra.mxu0 %v249
    %331 = vmatpush.msra.mxu0 %v248
    %332 = vmatpush.msra.mxu0 %v247
    %333 = vmatmul.f32.gmra.mxu0 %v306
    %v334 = vpop.f32.mrf.mxu0
    %v335 = vadd.f32 %v294, %v334
    %336 = vmatmul.f32.gmra.mxu0 %v309
    %v337 = vpop.f32.mrf.mxu0
    %v338 = vadd.f32 %v297, %v337
    %339 = vmatmul.f32.gmra.mxu0 %v312
    %v340 = vpop.f32.mrf.mxu0
    %v341 = vadd.f32 %v300, %v340
    %342 = vmatmul.f32.gmra.mxu0 %v315
    %v343 = vpop.f32.mrf.mxu0
    %v344 = vadd.f32 %v303, %v343
    %345 = vdwg.mxu0
    %v346 = vld [vmem:[%s8] sm:$0x1]
    %v348 = vperm.slane %v346, 0
    %v350 = vadd.f32 %v335, %v348
    %v351 = vadd.f32 %v338, %v348
    %v352 = vadd.f32 %v341, %v348
    %v353 = vadd.f32 %v344, %v348
    %v354 = vld [vmem:[#allocation9] sm:$0xff]
    %v355 = vld [vmem:[#allocation9 + $0x8] sm:$0xff]
    %v356 = vld [vmem:[#allocation9 + $0x10] sm:$0xff]
    %v357 = vld [vmem:[#allocation9 + $0x18] sm:$0xff]
    %v359 = vsel %vm205, %v354, 0
    %v362 = vsel %vm205, %v355, 0
    %v365 = vsel %vm205, %v356, 0
    %v368 = vsel %vm205, %v357, 0
    %370 = vmatpush.msra.mxu0 0.0
    %371 = vmatpush.msra.mxu0 0.0
    %372 = vmatpush.msra.mxu0 0.0
    %373 = vmatpush.msra.mxu0 0.0
    %374 = vmatpush.msra.mxu0 0.0
    %375 = vmatpush.msra.mxu0 0.0
    %376 = vmatpush.msra.mxu0 0.0
    %377 = vmatpush.msra.mxu0 0.0
    %378 = vmatpush.msra.mxu0 0.0
    %379 = vmatpush.msra.mxu0 0.0
    %380 = vmatpush.msra.mxu0 0.0
    %381 = vmatpush.msra.mxu0 0.0
    %382 = vmatpush.msra.mxu0 %v353
    %383 = vmatpush.msra.mxu0 %v352
    %384 = vmatpush.msra.mxu0 %v351
    %385 = vmatpush.msra.mxu0 %v350
    %386 = vmatmul.f32.gmra.mxu0 %v359
    %v387 = vpop.f32.mrf.mxu0
    %v388 = vadd.f32 0.0, %v387
    %389 = vmatmul.f32.gmra.mxu0 %v362
    %v390 = vpop.f32.mrf.mxu0
    %v391 = vadd.f32 0.0, %v390
    %392 = vmatmul.f32.gmra.mxu0 %v365
    %v393 = vpop.f32.mrf.mxu0
    %v394 = vadd.f32 0.0, %v393
    %395 = vmatmul.f32.gmra.mxu0 %v368
    %v396 = vpop.f32.mrf.mxu0
    %v397 = vadd.f32 0.0, %v396
    %398 = vdwg.mxu0
    %v399 = vld [vmem:[#allocation4] sm:$0xff]
    %v400 = vld [vmem:[#allocation4 + $0x8] sm:$0xff]
    %v401 = vld [vmem:[#allocation4 + $0x10] sm:$0xff]
    %v402 = vld [vmem:[#allocation7] sm:$0xff]
    %v403 = vld [vmem:[#allocation7 + $0x8] sm:$0xff]
    %v404 = vld [vmem:[#allocation7 + $0x10] sm:$0xff]
    %vm405 = vcmask 195584
    %v407 = vsel %vm405, %v402, 0
    %v410 = vsel %vm405, %v403, 0
    %v413 = vsel %vm405, %v404, 0
    %415 = vmatpush.msra.mxu0 0.0
    %416 = vmatpush.msra.mxu0 0.0
    %417 = vmatpush.msra.mxu0 0.0
    %418 = vmatpush.msra.mxu0 0.0
    %419 = vmatpush.msra.mxu0 0.0
    %420 = vmatpush.msra.mxu0 0.0
    %421 = vmatpush.msra.mxu0 0.0
    %422 = vmatpush.msra.mxu0 0.0
    %423 = vmatpush.msra.mxu0 0.0
    %424 = vmatpush.msra.mxu0 0.0
    %425 = vmatpush.msra.mxu0 0.0
    %426 = vmatpush.msra.mxu0 0.0
    %427 = vmatpush.msra.mxu0 0.0
    %428 = vmatpush.msra.mxu0 %v401
    %429 = vmatpush.msra.mxu0 %v400
    %430 = vmatpush.msra.mxu0 %v399
    %431 = vmatmul.f32.gmra.mxu0 %v407
    %v432 = vpop.f32.mrf.mxu0
    %v433 = vadd.f32 0.0, %v432
    %434 = vmatmul.f32.gmra.mxu0 %v410
    %v435 = vpop.f32.mrf.mxu0
    %v436 = vadd.f32 0.0, %v435
    %437 = vmatmul.f32.gmra.mxu0 %v413
    %v438 = vpop.f32.mrf.mxu0
    %v439 = vadd.f32 0.0, %v438
    %440 = vdwg.mxu0
    %v441 = vld [vmem:[#allocation15] sm:$0xff]
    %v442 = vld [vmem:[#allocation15 + $0x8] sm:$0xff]
    %v443 = vld [vmem:[#allocation15 + $0x10] sm:$0xff]
    %v444 = vld [vmem:[#allocation15 + $0x18] sm:$0xff]
    %v445 = vld [vmem:[#allocation15 + $0x20] sm:$0xff]
    %v446 = vld [vmem:[#allocation15 + $0x28] sm:$0xff]
    %v447 = vld [vmem:[#allocation15 + $0x30] sm:$0xff]
    %v448 = vld [vmem:[#allocation15 + $0x38] sm:$0xff]
    %v449 = vld [vmem:[#allocation16] sm:$0xff]
    %v450 = vld [vmem:[#allocation16 + $0x8] sm:$0xff]
    %v451 = vld [vmem:[#allocation16 + $0x10] sm:$0xff]
    %v452 = vld [vmem:[#allocation16 + $0x18] sm:$0xff]
    %v453 = vld [vmem:[#allocation16 + $0x20] sm:$0xff]
    %v454 = vld [vmem:[#allocation16 + $0x28] sm:$0xff]
    %v455 = vld [vmem:[#allocation16 + $0x30] sm:$0xff]
    %v456 = vld [vmem:[#allocation16 + $0x38] sm:$0xff]
    %v458 = vsel %vm263, %v399, 0
    %v461 = vsel %vm263, %v400, 0
    %v464 = vsel %vm263, %v401, 0
    %466 = vmatpush.msra.mxu0 0.0
    %467 = vmatpush.msra.mxu0 0.0
    %468 = vmatpush.msra.mxu0 0.0
    %469 = vmatpush.msra.mxu0 0.0
    %470 = vmatpush.msra.mxu0 0.0
    %471 = vmatpush.msra.mxu0 0.0
    %472 = vmatpush.msra.mxu0 0.0
    %473 = vmatpush.msra.mxu0 0.0
    %474 = vmatpush.msra.mxu0 %v456
    %475 = vmatpush.msra.mxu0 %v455
    %476 = vmatpush.msra.mxu0 %v454
    %477 = vmatpush.msra.mxu0 %v453
    %478 = vmatpush.msra.mxu0 %v452
    %479 = vmatpush.msra.mxu0 %v451
    %480 = vmatpush.msra.mxu0 %v450
    %481 = vmatpush.msra.mxu0 %v449
    %482 = vmatmul.f32.gmra.mxu0 %v458
    %v483 = vpop.f32.mrf.mxu0
    %v484 = vadd.f32 0.0, %v483
    %485 = vmatmul.f32.gmra.mxu0 %v461
    %v486 = vpop.f32.mrf.mxu0
    %v487 = vadd.f32 0.0, %v486
    %488 = vmatmul.f32.gmra.mxu0 %v464
    %v489 = vpop.f32.mrf.mxu0
    %v490 = vadd.f32 0.0, %v489
    %491 = vdwg.mxu0
    %v493 = vsel %vm263, %v433, 0
    %v496 = vsel %vm263, %v436, 0
    %v499 = vsel %vm263, %v439, 0
    %501 = vmatpush.msra.mxu0 0.0
    %502 = vmatpush.msra.mxu0 0.0
    %503 = vmatpush.msra.mxu0 0.0
    %504 = vmatpush.msra.mxu0 0.0
    %505 = vmatpush.msra.mxu0 0.0
    %506 = vmatpush.msra.mxu0 0.0
    %507 = vmatpush.msra.mxu0 0.0
    %508 = vmatpush.msra.mxu0 0.0
    %509 = vmatpush.msra.mxu0 %v448
    %510 = vmatpush.msra.mxu0 %v447
    %511 = vmatpush.msra.mxu0 %v446
    %512 = vmatpush.msra.mxu0 %v445
    %513 = vmatpush.msra.mxu0 %v444
    %514 = vmatpush.msra.mxu0 %v443
    %515 = vmatpush.msra.mxu0 %v442
    %516 = vmatpush.msra.mxu0 %v441
    %517 = vmatmul.f32.gmra.mxu0 %v493
    %v518 = vpop.f32.mrf.mxu0
    %v519 = vadd.f32 %v484, %v518
    %520 = vmatmul.f32.gmra.mxu0 %v496
    %v521 = vpop.f32.mrf.mxu0
    %v522 = vadd.f32 %v487, %v521
    %523 = vmatmul.f32.gmra.mxu0 %v499
    %v524 = vpop.f32.mrf.mxu0
    %v525 = vadd.f32 %v490, %v524
    %526 = vdwg.mxu0
    %v527 = vld [vmem:[%s11] sm:$0x1]
    %v529 = vperm.slane %v527, 0
    %v531 = vadd.f32 %v519, %v529
    %v532 = vadd.f32 %v522, %v529
    %v533 = vadd.f32 %v525, %v529
    %v534 = vld [vmem:[#allocation10] sm:$0xff]
    %v535 = vld [vmem:[#allocation10 + $0x8] sm:$0xff]
    %v536 = vld [vmem:[#allocation10 + $0x10] sm:$0xff]
    %v538 = vsel %vm405, %v534, 0
    %v541 = vsel %vm405, %v535, 0
    %v544 = vsel %vm405, %v536, 0
    %546 = vmatpush.msra.mxu0 0.0
    %547 = vmatpush.msra.mxu0 0.0
    %548 = vmatpush.msra.mxu0 0.0
    %549 = vmatpush.msra.mxu0 0.0
    %550 = vmatpush.msra.mxu0 0.0
    %551 = vmatpush.msra.mxu0 0.0
    %552 = vmatpush.msra.mxu0 0.0
    %553 = vmatpush.msra.mxu0 0.0
    %554 = vmatpush.msra.mxu0 0.0
    %555 = vmatpush.msra.mxu0 0.0
    %556 = vmatpush.msra.mxu0 0.0
    %557 = vmatpush.msra.mxu0 0.0
    %558 = vmatpush.msra.mxu0 0.0
    %559 = vmatpush.msra.mxu0 %v533
    %560 = vmatpush.msra.mxu0 %v532
    %561 = vmatpush.msra.mxu0 %v531
    %562 = vmatmul.f32.gmra.mxu0 %v538
    %v563 = vpop.f32.mrf.mxu0
    %v564 = vadd.f32 0.0, %v563
    %565 = vmatmul.f32.gmra.mxu0 %v541
    %v566 = vpop.f32.mrf.mxu0
    %v567 = vadd.f32 0.0, %v566
    %568 = vmatmul.f32.gmra.mxu0 %v544
    %v569 = vpop.f32.mrf.mxu0
    %v570 = vadd.f32 0.0, %v569
    %571 = vdwg.mxu0
    %v573 = vsel %vm263, %v388, 0
    %v576 = vsel %vm263, %v391, 0
    %v579 = vsel %vm263, %v394, 0
    %v582 = vsel %vm263, %v397, 0
    %v585 = vsel %vm263, %v564, 0
    %v588 = vsel %vm263, %v567, 0
    %v591 = vsel %vm263, %v570, 0
    %593 = vmatpush.xpose.msra.mxu0 0.0
    %594 = vmatpush.xpose.msra.mxu0 0.0
    %595 = vmatpush.xpose.msra.mxu0 0.0
    %596 = vmatpush.xpose.msra.mxu0 0.0
    %597 = vmatpush.xpose.msra.mxu0 0.0
    %598 = vmatpush.xpose.msra.mxu0 0.0
    %599 = vmatpush.xpose.msra.mxu0 0.0
    %600 = vmatpush.xpose.msra.mxu0 0.0
    %601 = vmatpush.xpose.msra.mxu0 0.0
    %602 = vmatpush.xpose.msra.mxu0 0.0
    %603 = vmatpush.xpose.msra.mxu0 0.0
    %604 = vmatpush.xpose.msra.mxu0 0.0
    %605 = vmatpush.xpose.msra.mxu0 0.0
    %606 = vmatpush.xpose.msra.mxu0 %v591
    %607 = vmatpush.xpose.msra.mxu0 %v588
    %608 = vmatpush.xpose.msra.mxu0 %v585
    %609 = vmatmul.f32.gmra.mxu0 %v573
    %v610 = vpop.f32.mrf.mxu0
    %v611 = vadd.f32 0.0, %v610
    %612 = vmatmul.f32.gmra.mxu0 %v576
    %v613 = vpop.f32.mrf.mxu0
    %v614 = vadd.f32 0.0, %v613
    %615 = vmatmul.f32.gmra.mxu0 %v579
    %v616 = vpop.f32.mrf.mxu0
    %v617 = vadd.f32 0.0, %v616
    %618 = vmatmul.f32.gmra.mxu0 %v582
    %v619 = vpop.f32.mrf.mxu0
    %v620 = vadd.f32 0.0, %v619
    %621 = vdwg.mxu0
    %622 = vst.msk [vmem:[%s12] sm:$0xff] %vm405, %v611
    %623 = vst.msk [vmem:[%s12 + $0x8] sm:$0xff] %vm405, %v614
    %624 = vst.msk [vmem:[%s12 + $0x10] sm:$0xff] %vm405, %v617
    %625 = vst.msk [vmem:[%s12 + $0x18] sm:$0xff] %vm405, %v620
    // Predicated region
    $region90: #{tpu_custom_call.1} parent=1 // pred_check
      _
    $region91: #{tpu_custom_call.1} parent=1 // pred_check_branch
      %627 = sbr.rel (0) target = $region93
    $region92: #{tpu_custom_call.1} parent=1 // pred_region
      _
    $region93: #{tpu_custom_call.1} parent=1 // pred_fallthru
      _
    // Predicated region
    $region94: #{tpu_custom_call.1} parent=1 // pred_check
      _
    $region95: #{tpu_custom_call.1} parent=1 // pred_check_branch
      %629 = sbr.rel (0) target = $region97
    $region96: #{tpu_custom_call.1} parent=1 // pred_region
      _
    $region97: #{tpu_custom_call.1} parent=1 // pred_fallthru
      _
    %630 = vsyncpa [#allocation3], 1
    %631 = vsyncpa [#allocation5], 1
    %632 = vsyncpa [#allocation8], 1
    %633 = vsyncpa [#allocation11], 1
    %634 = vsyncpa [#allocation14], 1
    %635 = vsyncpa [#allocation17], 1

</llo_original>
